<compile_context>
chip_gen: v5e
topology: v5e:2x2
jax: 0.10.0
libtpu: 0.0.40
codegen_flags: <defaults>
</compile_context>

<pallas_src>
import functools

import jax
import jax.numpy as jnp
from jax import lax
from jax.experimental import pallas as pl
from jax.experimental.pallas import tpu as pltpu

LANES = 128
DEFAULT_ROW_TILE = 1024  # 1024x128xf32 = 512 KiB per input block
N_CORES = 2              # leading "parallel" grid axis (v7x megacore)


def _precision_kernel(o_ref, t_ref, out_ref, tp_acc, fp_acc, *,
                      row_tile, bpc, rows):
    c = pl.program_id(0)   # core chunk (parallel)
    k = pl.program_id(1)   # reduction step (arbitrary)

    @pl.when(k == 0)
    def _():
        tp_acc[...] = jnp.zeros_like(tp_acc)
        fp_acc[...] = jnp.zeros_like(fp_acc)

    # Global row index of each element in this block; rows >= `rows` are
    # either Pallas partial-block garbage or clamped duplicate blocks and
    # must not contribute.
    row0 = (c * bpc + k) * row_tile
    row_ids = row0 + lax.broadcasted_iota(jnp.int32, (row_tile, LANES), 0)
    valid = row_ids < rows

    o = o_ref[...].astype(jnp.float32)
    t = t_ref[...].astype(jnp.float32)

    # Threshold outputs at 0.5 -> {0.0, 1.0} (matches torch.where(o >= 0.5, 1, 0)).
    ob = jnp.where(o >= 0.5, 1.0, 0.0)
    pos = t == 1.0

    # tp: target == 1 and binarized output equals target.
    # fp: target != 1 and binarized output differs from target.
    tp_acc[...] += jnp.where(valid & pos & (ob == t), 1.0, 0.0)
    fp_acc[...] += jnp.where(valid & jnp.logical_not(pos) & (ob != t), 1.0, 0.0)

    @pl.when(k == pl.num_programs(1) - 1)
    def _():
        tp = jnp.sum(tp_acc[...])
        fp = jnp.sum(fp_acc[...])
        lane = lax.broadcasted_iota(jnp.int32, (1, 1, LANES), 2)
        # lane 0 -> tp, lane 1 -> fp, rest zero (single unmasked vector store).
        out_ref[...] = jnp.where(lane == 0, tp, jnp.where(lane == 1, fp, 0.0))


def precision(outputs, targets, *, row_tile=DEFAULT_ROW_TILE):
    """Pallas implementation of the Precision metric (tp / (tp + fp))."""
    o = outputs.reshape(-1)
    t = targets.reshape(-1)
    n = o.shape[0]

    # Minimal lane-alignment pad only (at most 127 elements). Padded values
    # (o=0 -> binarizes to 0, t=0) are neither tp nor fp, so counts are safe.
    rem = n % LANES
    if rem:
        pad = LANES - rem
        o = jnp.pad(o, (0, pad))
        t = jnp.pad(t, (0, pad))

    rows = o.shape[0] // LANES
    if rows <= row_tile:
        row_tile = rows  # full-extent block (always a legal block shape)

    nblocks = pl.cdiv(rows, row_tile)
    bpc = pl.cdiv(nblocks, N_CORES)  # row-blocks per core chunk

    o2 = o.reshape(rows, LANES)
    t2 = t.reshape(rows, LANES)

    def in_map(c, k):
        # Clamp so the DMA never targets a block past the array; clamped
        # (duplicate) blocks are fully masked out inside the kernel.
        return (jnp.minimum(c * bpc + k, nblocks - 1), 0)

    kernel = functools.partial(
        _precision_kernel, row_tile=row_tile, bpc=bpc, rows=rows
    )

    parts = pl.pallas_call(
        kernel,
        out_shape=jax.ShapeDtypeStruct((N_CORES, 1, LANES), jnp.float32),
        grid_spec=pltpu.PrefetchScalarGridSpec(
            num_scalar_prefetch=0,
            grid=(N_CORES, bpc),
            in_specs=[
                pl.BlockSpec((row_tile, LANES), in_map),
                pl.BlockSpec((row_tile, LANES), in_map),
            ],
            out_specs=pl.BlockSpec((1, 1, LANES), lambda c, k: (c, 0, 0)),
            scratch_shapes=[
                pltpu.VMEM((row_tile, LANES), jnp.float32),  # tp accumulator
                pltpu.VMEM((row_tile, LANES), jnp.float32),  # fp accumulator
            ],
        ),
        compiler_params=pltpu.CompilerParams(
            dimension_semantics=("parallel", "arbitrary")
        ),
    )(o2, t2)

    tp = jnp.sum(parts[:, 0, 0])
    fp = jnp.sum(parts[:, 0, 1])
    # Matches the PyTorch module exactly: 0/0 -> NaN when there are no
    # predicted positives (torchmetrics would return 0 instead).
    return tp / (tp + fp)


def _precision_ref(outputs, targets):
    o = jnp.where(outputs >= 0.5, 1.0, 0.0).ravel()
    t = jnp.ravel(targets)
    pos = t == 1.0
    tp = jnp.sum(jnp.where(pos & (o == t), 1.0, 0.0))
    fp = jnp.sum(jnp.where(jnp.logical_not(pos) & (o != t), 1.0, 0.0))
    return tp / (tp + fp)


if __name__ == "__main__":
    key = jax.random.PRNGKey(0)
    k1, k2 = jax.random.split(key)

    # outputs: probabilities in [0, 1]; targets: binary {0., 1.}   (NCHW)
    outputs = jax.random.uniform(k1, (2, 4, 16, 16), dtype=jnp.float32)
    targets = jax.random.bernoulli(k2, p=0.5, shape=(2, 4, 16, 16)).astype(
        jnp.float32
    )

    result = precision(outputs, targets)
    jax.block_until_ready(result)

    ref = _precision_ref(outputs, targets)
    assert jnp.allclose(result, ref, rtol=1e-6, atol=1e-6), (result, ref)

    print("KERNEL_OK")
</pallas_src>

<mosaic_0001>
module attributes {stable_mosaic.version = 11 : i64} {
  func.func @_precision_kernel(%arg0: i32, %arg1: i32, %arg2: memref<16x128xf32, #tpu.memory_space<vmem>>, %arg3: memref<16x128xf32, #tpu.memory_space<vmem>>, %arg4: memref<1x1x128xf32, #tpu.memory_space<vmem>>, %arg5: memref<16x128xf32, #tpu.memory_space<vmem>>, %arg6: memref<16x128xf32, #tpu.memory_space<vmem>>) attributes {dimension_semantics = [#tpu.dimension_semantics<parallel>, #tpu.dimension_semantics<arbitrary>], iteration_bounds = array<i64: 2, 1>, scalar_prefetch = 0 : i64, scratch_operands = 2 : i64, tpu.core_type = #tpu.core_type<tc>, window_params = [{transform_indices = @transform_0, window_bounds = array<i64: 16, 128>}, {transform_indices = @transform_1, window_bounds = array<i64: 16, 128>}, {transform_indices = @transform_2, window_bounds = array<i64: 1, 1, 128>}]} {
    %c0_i32 = arith.constant 0 : i32
    %0 = arith.cmpi eq, %arg1, %c0_i32 : i32
    %1 = arith.extui %0 : i1 to i32
    %c0_i32_0 = arith.constant 0 : i32
    %2 = arith.cmpi ne, %1, %c0_i32_0 : i32
    scf.if %2 {
      %cst_23 = arith.constant 0.000000e+00 : f32
      %42 = vector.broadcast %cst_23 : f32 to vector<16x128xf32>
      %c0_24 = arith.constant 0 : index
      %c0_25 = arith.constant 0 : index
      %43 = vector.load %arg5[%c0_24, %c0_25] : memref<16x128xf32, #tpu.memory_space<vmem>>, vector<16x128xf32>
      tpu.vector_store %arg5[%c0_24, %c0_25], %42 {strides = array<i32>} : memref<16x128xf32, #tpu.memory_space<vmem>>, vector<16x128xf32>,
      %cst_26 = arith.constant 0.000000e+00 : f32
      %44 = vector.broadcast %cst_26 : f32 to vector<16x128xf32>
      %c0_27 = arith.constant 0 : index
      %c0_28 = arith.constant 0 : index
      %45 = vector.load %arg6[%c0_27, %c0_28] : memref<16x128xf32, #tpu.memory_space<vmem>>, vector<16x128xf32>
      tpu.vector_store %arg6[%c0_27, %c0_28], %44 {strides = array<i32>} : memref<16x128xf32, #tpu.memory_space<vmem>>, vector<16x128xf32>,
    } else {
    }
    %c1_i32 = arith.constant 1 : i32
    %3 = arith.muli %arg0, %c1_i32 : i32
    %4 = arith.addi %3, %arg1 : i32
    %c16_i32 = arith.constant 16 : i32
    %5 = arith.muli %4, %c16_i32 : i32
    %6 = tpu.iota {dimensions = array<i32: 0>} : vector<16x128xi32>
    %7 = vector.broadcast %5 : i32 to vector<16x128xi32>
    %8 = arith.addi %7, %6 : vector<16x128xi32>
    %c16_i32_1 = arith.constant 16 : i32
    %9 = vector.broadcast %c16_i32_1 : i32 to vector<16x128xi32>
    %10 = arith.cmpi slt, %8, %9 : vector<16x128xi32>
    %c0 = arith.constant 0 : index
    %c0_2 = arith.constant 0 : index
    %11 = vector.load %arg2[%c0, %c0_2] : memref<16x128xf32, #tpu.memory_space<vmem>>, vector<16x128xf32>
    %c0_3 = arith.constant 0 : index
    %c0_4 = arith.constant 0 : index
    %12 = vector.load %arg3[%c0_3, %c0_4] : memref<16x128xf32, #tpu.memory_space<vmem>>, vector<16x128xf32>
    %cst = arith.constant 5.000000e-01 : f32
    %13 = vector.broadcast %cst : f32 to vector<16x128xf32>
    %14 = arith.cmpf oge, %11, %13 : vector<16x128xf32>
    %cst_5 = arith.constant 1.000000e+00 : f32
    %cst_6 = arith.constant 0.000000e+00 : f32
    %15 = vector.broadcast %cst_5 : f32 to vector<16x128xf32>
    %16 = vector.broadcast %cst_6 : f32 to vector<16x128xf32>
    %17 = arith.select %14, %15, %16 : vector<16x128xi1>, vector<16x128xf32>
    %cst_7 = arith.constant 1.000000e+00 : f32
    %18 = vector.broadcast %cst_7 : f32 to vector<16x128xf32>
    %19 = arith.cmpf oeq, %12, %18 : vector<16x128xf32>
    %c0_8 = arith.constant 0 : index
    %c0_9 = arith.constant 0 : index
    %20 = vector.load %arg5[%c0_8, %c0_9] : memref<16x128xf32, #tpu.memory_space<vmem>>, vector<16x128xf32>
    %21 = arith.andi %10, %19 : vector<16x128xi1>
    %22 = arith.cmpf oeq, %17, %12 : vector<16x128xf32>
    %23 = arith.andi %21, %22 : vector<16x128xi1>
    %cst_10 = arith.constant 1.000000e+00 : f32
    %cst_11 = arith.constant 0.000000e+00 : f32
    %24 = vector.broadcast %cst_10 : f32 to vector<16x128xf32>
    %25 = vector.broadcast %cst_11 : f32 to vector<16x128xf32>
    %26 = arith.select %23, %24, %25 : vector<16x128xi1>, vector<16x128xf32>
    %27 = arith.addf %20, %26 : vector<16x128xf32>
    %c0_12 = arith.constant 0 : index
    %c0_13 = arith.constant 0 : index
    %28 = vector.load %arg5[%c0_12, %c0_13] : memref<16x128xf32, #tpu.memory_space<vmem>>, vector<16x128xf32>
    tpu.vector_store %arg5[%c0_12, %c0_13], %27 {strides = array<i32>} : memref<16x128xf32, #tpu.memory_space<vmem>>, vector<16x128xf32>,
    %c0_14 = arith.constant 0 : index
    %c0_15 = arith.constant 0 : index
    %29 = vector.load %arg6[%c0_14, %c0_15] : memref<16x128xf32, #tpu.memory_space<vmem>>, vector<16x128xf32>
    %cst_16 = arith.constant dense<true> : vector<16x128xi1>
    %30 = arith.xori %19, %cst_16 : vector<16x128xi1>
    %31 = arith.andi %10, %30 : vector<16x128xi1>
    %32 = arith.cmpf one, %17, %12 : vector<16x128xf32>
    %33 = arith.andi %31, %32 : vector<16x128xi1>
    %cst_17 = arith.constant 1.000000e+00 : f32
    %cst_18 = arith.constant 0.000000e+00 : f32
    %34 = vector.broadcast %cst_17 : f32 to vector<16x128xf32>
    %35 = vector.broadcast %cst_18 : f32 to vector<16x128xf32>
    %36 = arith.select %33, %34, %35 : vector<16x128xi1>, vector<16x128xf32>
    %37 = arith.addf %29, %36 : vector<16x128xf32>
    %c0_19 = arith.constant 0 : index
    %c0_20 = arith.constant 0 : index
    %38 = vector.load %arg6[%c0_19, %c0_20] : memref<16x128xf32, #tpu.memory_space<vmem>>, vector<16x128xf32>
    tpu.vector_store %arg6[%c0_19, %c0_20], %37 {strides = array<i32>} : memref<16x128xf32, #tpu.memory_space<vmem>>, vector<16x128xf32>,
    %c0_i32_21 = arith.constant 0 : i32
    %39 = arith.cmpi eq, %arg1, %c0_i32_21 : i32
    %40 = arith.extui %39 : i1 to i32
    %c0_i32_22 = arith.constant 0 : i32
    %41 = arith.cmpi ne, %40, %c0_i32_22 : i32
    scf.if %41 {
      %c0_23 = arith.constant 0 : index
      %c0_24 = arith.constant 0 : index
      %42 = vector.load %arg5[%c0_23, %c0_24] : memref<16x128xf32, #tpu.memory_space<vmem>>, vector<16x128xf32>
      %43 = vector.shape_cast %42 : vector<16x128xf32> to vector<1x16x128xf32>
      %cst_25 = arith.constant dense<0.000000e+00> : vector<1xf32>
      %44 = vector.multi_reduction <add>, %43, %cst_25 [1, 2] : vector<1x16x128xf32> to vector<1xf32>
      %45 = vector.shape_cast %44 : vector<1xf32> to vector<1x1x1xf32>
      %46 = vector.extract %45[0, 0, 0] : f32 from vector<1x1x1xf32>
      %c0_26 = arith.constant 0 : index
      %c0_27 = arith.constant 0 : index
      %47 = vector.load %arg6[%c0_26, %c0_27] : memref<16x128xf32, #tpu.memory_space<vmem>>, vector<16x128xf32>
      %48 = vector.shape_cast %47 : vector<16x128xf32> to vector<1x16x128xf32>
      %cst_28 = arith.constant dense<0.000000e+00> : vector<1xf32>
      %49 = vector.multi_reduction <add>, %48, %cst_28 [1, 2] : vector<1x16x128xf32> to vector<1xf32>
      %50 = vector.shape_cast %49 : vector<1xf32> to vector<1x1x1xf32>
      %51 = vector.extract %50[0, 0, 0] : f32 from vector<1x1x1xf32>
      %52 = tpu.iota {dimensions = array<i32: 2>} : vector<1x1x128xi32>
      %c0_i32_29 = arith.constant 0 : i32
      %53 = vector.broadcast %c0_i32_29 : i32 to vector<1x1x128xi32>
      %54 = arith.cmpi eq, %52, %53 : vector<1x1x128xi32>
      %c1_i32_30 = arith.constant 1 : i32
      %55 = vector.broadcast %c1_i32_30 : i32 to vector<1x1x128xi32>
      %56 = arith.cmpi eq, %52, %55 : vector<1x1x128xi32>
      %cst_31 = arith.constant 0.000000e+00 : f32
      %57 = vector.broadcast %51 : f32 to vector<1x1x128xf32>
      %58 = vector.broadcast %cst_31 : f32 to vector<1x1x128xf32>
      %59 = arith.select %56, %57, %58 : vector<1x1x128xi1>, vector<1x1x128xf32>
      %60 = vector.broadcast %46 : f32 to vector<1x1x128xf32>
      %61 = arith.select %54, %60, %59 : vector<1x1x128xi1>, vector<1x1x128xf32>
      %c0_32 = arith.constant 0 : index
      %c0_33 = arith.constant 0 : index
      %c0_34 = arith.constant 0 : index
      %62 = vector.load %arg4[%c0_32, %c0_33, %c0_34] : memref<1x1x128xf32, #tpu.memory_space<vmem>>, vector<1x1x128xf32>
      tpu.vector_store %arg4[%c0_32, %c0_33, %c0_34], %61 {strides = array<i32>} : memref<1x1x128xf32, #tpu.memory_space<vmem>>, vector<1x1x128xf32>,
    } else {
    }
    return
  }
  func.func @transform_0(%arg0: i32, %arg1: i32) -> (i32, i32) {
    %c1_i32 = arith.constant 1 : i32
    %0 = arith.muli %arg0, %c1_i32 : i32
    %1 = arith.addi %0, %arg1 : i32
    %c0_i32 = arith.constant 0 : i32
    %2 = arith.minsi %1, %c0_i32 : i32
    %c0_i32_0 = arith.constant 0 : i32
    %c0_i32_1 = arith.constant 0 : i32
    return %2, %c0_i32_0 : i32, i32
  }
  func.func @transform_1(%arg0: i32, %arg1: i32) -> (i32, i32) {
    %c1_i32 = arith.constant 1 : i32
    %0 = arith.muli %arg0, %c1_i32 : i32
    %1 = arith.addi %0, %arg1 : i32
    %c0_i32 = arith.constant 0 : i32
    %2 = arith.minsi %1, %c0_i32 : i32
    %c0_i32_0 = arith.constant 0 : i32
    %c0_i32_1 = arith.constant 0 : i32
    return %2, %c0_i32_0 : i32, i32
  }
  func.func @transform_2(%arg0: i32, %arg1: i32) -> (i32, i32, i32) {
    %c0_i32 = arith.constant 0 : i32
    %c0_i32_0 = arith.constant 0 : i32
    %c0_i32_1 = arith.constant 0 : i32
    return %arg0, %c0_i32, %c0_i32_0 : i32, i32, i32
  }
}

</mosaic_0001>

<llo_original>
// kernel: tpu_custom_call.1
$region0: #{tpu_custom_call.1}
  #allocation0 [shape = 'u32[]', space=smem, size = 0x4, offset = 0x4, fixed_abs, tag = 'smem constant byte address 0x4 - core index']
  #allocation1 [shape = 'u32[72,128]{1,0:T(1,128)}', space=vmem, size = 0x9000, scoped, tag = 'internal scratch']
  #allocation2 [shape = 'f32[16,128]{1,0:T(8,128)}', space=vmem, size = 0x2000, scoped, tag = 'scratch operand']
  #allocation3 [shape = 'f32[16,128]{1,0:T(8,128)}', space=vmem, size = 0x2000, scoped, tag = 'scratch operand']
  %s0 = inlined_call_operand.hbm [shape: f32[16,128], index: 0, kind: input, shape index: {}]
  %s1 = inlined_call_operand.hbm [shape: f32[16,128], index: 1, kind: input, shape index: {}]
  %s2 = inlined_call_operand.hbm [shape: f32[2,1,128], index: 2, kind: output, shape index: {}]
  %s3 = sld [smem:[#allocation0]]
  $region57: #{tpu_custom_call.1} parent=0
    _
  %s5 = ssub.s32 1, %s3
  %s6 = scalar_select 0, %s5, %s3
  $region1: #{tpu_custom_call.1} parent=0
    #allocation4 [shape = 'u8[16384]{0}', space=vmem, size = 0x4000, scoped, tag = 'input window, operand 0']
    #allocation5 [shape = 's32[2]{0}', space=sflag, size = 0x8, scoped, tag = 'scoped memory for tpu_custom_call.1']
    #allocation6 [shape = 's32[2]{0}', space=sflag, size = 0x8, scoped, tag = 'scoped memory for tpu_custom_call.1']
    #allocation7 [shape = 'u8[16384]{0}', space=vmem, size = 0x4000, scoped, tag = 'input window, operand 1']
    #allocation8 [shape = 's32[2]{0}', space=sflag, size = 0x8, scoped, tag = 'scoped memory for tpu_custom_call.1']
    #allocation9 [shape = 'u8[1024]{0}', space=vmem, size = 0x400, scoped, tag = 'output window, operand 0']
    %7 = vsyncpa [#allocation5], 0
    %s8 = scalar_lea.sflag [#allocation5], 1
    %9 = vsyncpa %s8, 0
    %10 = vsyncpa [#allocation8], 0
    %s11 = scalar_lea.sflag [#allocation8], 1
    %12 = vsyncpa %s11, 0
    %13 = vsyncpa [#allocation6], 0
    %s14 = scalar_lea.sflag [#allocation6], 1
    %15 = vsyncpa %s14, 0
    loop: start=0, step=1, limit=4
    $region2: #{tpu_custom_call.1} parent=1 // loop_pre_header
      _
    $region3: #{tpu_custom_call.1} parent=1 // loop_header
      %s17 = sphi 0, %s21
      %p18 = scmp.ge.s32.totalorder %s17, 4
      %s24 = sphi 0, %s36
      %s25 = sphi 0, %s32
      %s26 = sphi 0, %s24
      %s27 = sphi 0, %s25
      %s28 = sphi 0, %s26
      %s29 = sphi 0, %s27
      %s45 = sphi 0, %s47
      %s48 = sphi 0, %s45
      %s49 = sphi 0, %s48
      %s65 = sphi 0, %s49
      %s77 = sphi 0, %s79
      %s80 = sphi 0, %s77
      %s81 = sphi 0, %s80
      %s97 = sphi 0, %s81
      %s103 = sphi 0, %s105
      %s106 = sphi 0, %s103
      %s107 = sphi 0, %s106
      %s123 = sphi 0, %s107
    $region4: #{tpu_custom_call.1} parent=1 // loop_header_branch
      %20 = sbr.rel (%p18) target = $region8
    $region5: #{tpu_custom_call.1} parent=1 // loop_body
      %s22 = ssub.s32 %s17, 1
      %s23 = ssub.s32 %s17, 2
      %s30 = sadd.s32 1, %s25
      %p31 = scmp.ge.s32.totalorder %s30, 1
      %s32 = scalar_select %p31, 0, %s30
      %s33 = sadd.s32 1, %s24
      %s34 = scalar_select %p31, %s33, %s24
      %p35 = scmp.ge.s32.totalorder %s34, 2
      %s36 = scalar_select %p35, 0, %s34
      %s37 = sadd.s32 %s24, %s25
      %p38 = scmp.lt.s32.totalorder %s37, 0
      %s39 = scalar_select %p38, %s37, 0
      %s40 = sadd.s32 %s36, %s32
      %p41 = scmp.lt.s32.totalorder %s40, 0
      %s42 = scalar_select %p41, %s40, 0
      %s43 = ssub.s32 %s39, %s42
      %p44 = scmp.eq.s32.totalorder %s43, 0
      %s46 = sadd.s32 %s45, 1
      %s47 = scalar_select %p44, %s45, %s46
      %p50 = pneg %p44
      %p51 = scmp.eq.s32.totalorder %s17, 1
      %p52 = por %p50, %p51
      %p53 = scmp.ne.s32.totalorder %s45, %s48
      %p54 = scmp.eq.s32.totalorder %s17, 0
      %p55 = por %p53, %p54
      %p56 = scmp.ne.s32.totalorder %s45, %s48
      %p57 = scmp.eq.s32.totalorder %s22, 1
      %p58 = por %p56, %p57
      %p59 = scmp.ne.s32.totalorder %s48, %s49
      %p60 = scmp.eq.s32.totalorder %s22, 0
      %p61 = por %p59, %p60
      %p62 = scmp.ne.s32.totalorder %s48, %s49
      %p63 = scmp.eq.s32.totalorder %s23, 1
      %p64 = por %p62, %p63
      %p66 = scmp.ne.s32.totalorder %s49, %s65
      %p67 = scmp.eq.s32.totalorder %s23, 0
      %p68 = por %p66, %p67
      %s69 = sadd.s32 %s24, %s25
      %p70 = scmp.lt.s32.totalorder %s69, 0
      %s71 = scalar_select %p70, %s69, 0
      %s72 = sadd.s32 %s36, %s32
      %p73 = scmp.lt.s32.totalorder %s72, 0
      %s74 = scalar_select %p73, %s72, 0
      %s75 = ssub.s32 %s71, %s74
      %p76 = scmp.eq.s32.totalorder %s75, 0
      %s78 = sadd.s32 %s77, 1
      %s79 = scalar_select %p76, %s77, %s78
      %p82 = pneg %p76
      %p83 = scmp.eq.s32.totalorder %s17, 1
      %p84 = por %p82, %p83
      %p85 = scmp.ne.s32.totalorder %s77, %s80
      %p86 = scmp.eq.s32.totalorder %s17, 0
      %p87 = por %p85, %p86
      %p88 = scmp.ne.s32.totalorder %s77, %s80
      %p89 = scmp.eq.s32.totalorder %s22, 1
      %p90 = por %p88, %p89
      %p91 = scmp.ne.s32.totalorder %s80, %s81
      %p92 = scmp.eq.s32.totalorder %s22, 0
      %p93 = por %p91, %p92
      %p94 = scmp.ne.s32.totalorder %s80, %s81
      %p95 = scmp.eq.s32.totalorder %s23, 1
      %p96 = por %p94, %p95
      %p98 = scmp.ne.s32.totalorder %s81, %s97
      %p99 = scmp.eq.s32.totalorder %s23, 0
      %p100 = por %p98, %p99
      %s101 = ssub.s32 %s24, %s36
      %p102 = scmp.eq.s32.totalorder %s101, 0
      %s104 = sadd.s32 %s103, 1
      %s105 = scalar_select %p102, %s103, %s104
      %p108 = pneg %p102
      %p109 = scmp.eq.s32.totalorder %s17, 1
      %p110 = por %p108, %p109
      %p111 = scmp.ne.s32.totalorder %s103, %s106
      %p112 = scmp.eq.s32.totalorder %s17, 0
      %p113 = por %p111, %p112
      %p114 = scmp.ne.s32.totalorder %s103, %s106
      %p115 = scmp.eq.s32.totalorder %s22, 1
      %p116 = por %p114, %p115
      %p117 = scmp.ne.s32.totalorder %s106, %s107
      %p118 = scmp.eq.s32.totalorder %s22, 0
      %p119 = por %p117, %p118
      %p120 = scmp.ne.s32.totalorder %s106, %s107
      %p121 = scmp.eq.s32.totalorder %s23, 1
      %p122 = por %p120, %p121
      %p124 = scmp.ne.s32.totalorder %s107, %s123
      %p125 = scmp.eq.s32.totalorder %s23, 0
      %p126 = por %p124, %p125
      %p127 = scmp.le.s32.totalorder 1, %s17
      %p128 = scmp.lt.s32.totalorder %s17, 3
      %p129 = pnand %p127, %p128
      %p130 = pneg %p129
      // Predicated region
      $region9: #{tpu_custom_call.1} parent=5 // pred_check
        _
      $region10: #{tpu_custom_call.1} parent=5 // pred_check_branch
        %132 = sbr.rel (%p129) target = $region12
      $region11: #{tpu_custom_call.1} parent=5 // pred_region
        %s133 = ssub.s32 %s17, 1
      $region12: #{tpu_custom_call.1} parent=5 // pred_fallthru
        _
      %p134 = scmp.lt.s32.totalorder %s17, 2
      // Predicated region
      $region13: #{tpu_custom_call.1} parent=5 // pred_check
        %p135 = pneg %p134
      $region14: #{tpu_custom_call.1} parent=5 // pred_check_branch
        %137 = sbr.rel (%p135) target = $region16
      $region15: #{tpu_custom_call.1} parent=5 // pred_region
        // Predicated region
        $region17: #{tpu_custom_call.1} parent=15 // pred_check
          %p138 = pneg %p55
        $region18: #{tpu_custom_call.1} parent=15 // pred_check_branch
          %140 = sbr.rel (%p138) target = $region20
        $region19: #{tpu_custom_call.1} parent=15 // pred_region
          %s141 = sand.u32 %s45, 1
          %s142 = scalar_lea.sflag [#allocation5], %s141
          %s143 = sand.u32 %s45, 1
          %s144 = smul.addr %s143, 16
          %s145 = scalar_lea.vmem [#allocation4], %s144
          %s146 = sadd.s32 %s24, %s25
          %p147 = scmp.lt.s32.totalorder %s146, 0
          %s148 = scalar_select %p147, %s146, 0
          %s149 = smul.u32 2, %s148
          %151 = vsyncadd %s142, 0
          %s152 = smul.addr %s149, 8
          %s153 = scalar_lea.hbm %s0, %s152
          %s154 = sshll.u32 %s153, 4
          %s155 = int_to_ptr.hbm [resolvable:$true] %s154
          %s156 = sshll.u32 %s145, 4
          %s157 = int_to_ptr.vmem [resolvable:$true] %s156
          %162 = dma.hbm_to_vmem [thread:$0]  %s155, 256, %s157, %s142, 128, 128, 8
        $region20: #{tpu_custom_call.1} parent=15 // pred_fallthru
          _
        // Predicated region
        $region21: #{tpu_custom_call.1} parent=15 // pred_check
          %p163 = pneg %p87
        $region22: #{tpu_custom_call.1} parent=15 // pred_check_branch
          %165 = sbr.rel (%p163) target = $region24
        $region23: #{tpu_custom_call.1} parent=15 // pred_region
          %s166 = sand.u32 %s77, 1
          %s167 = scalar_lea.sflag [#allocation8], %s166
          %s168 = sand.u32 %s77, 1
          %s169 = smul.addr %s168, 16
          %s170 = scalar_lea.vmem [#allocation7], %s169
          %s171 = sadd.s32 %s24, %s25
          %p172 = scmp.lt.s32.totalorder %s171, 0
          %s173 = scalar_select %p172, %s171, 0
          %s174 = smul.u32 2, %s173
          %176 = vsyncadd %s167, 0
          %s177 = smul.addr %s174, 8
          %s178 = scalar_lea.hbm %s1, %s177
          %s179 = sshll.u32 %s178, 4
          %s180 = int_to_ptr.hbm [resolvable:$true] %s179
          %s181 = sshll.u32 %s170, 4
          %s182 = int_to_ptr.vmem [resolvable:$true] %s181
          %187 = dma.hbm_to_vmem [thread:$0]  %s180, 256, %s182, %s167, 128, 128, 8
        $region24: #{tpu_custom_call.1} parent=15 // pred_fallthru
          _
      $region16: #{tpu_custom_call.1} parent=5 // pred_fallthru
        _
      %p188 = scmp.le.s32.totalorder 1, %s17
      %p189 = scmp.lt.s32.totalorder %s17, 3
      %p190 = pnand %p188, %p189
      %p191 = pneg %p190
      // Predicated region
      $region25: #{tpu_custom_call.1} parent=5 // pred_check
        _
      $region26: #{tpu_custom_call.1} parent=5 // pred_check_branch
        %193 = sbr.rel (%p190) target = $region28
      $region27: #{tpu_custom_call.1} parent=5 // pred_region
        %s194 = ssub.s32 %s17, 1
        %s195 = sand.u32 %s48, 1
        %s196 = scalar_lea.sflag [#allocation5], %s195
        %s197 = sand.u32 %s48, 1
        %s198 = smul.addr %s197, 16
        %s199 = scalar_lea.vmem [#allocation4], %s198
        // Predicated region
        $region29: #{tpu_custom_call.1} parent=27 // pred_check
          %p200 = pneg %p61
        $region30: #{tpu_custom_call.1} parent=27 // pred_check_branch
          %202 = sbr.rel (%p200) target = $region32
        $region31: #{tpu_custom_call.1} parent=27 // pred_region
          %204 = dma.done %s196, 256
        $region32: #{tpu_custom_call.1} parent=27 // pred_fallthru
          _
        %s205 = sand.u32 %s80, 1
        %s206 = scalar_lea.sflag [#allocation8], %s205
        %s207 = sand.u32 %s80, 1
        %s208 = smul.addr %s207, 16
        %s209 = scalar_lea.vmem [#allocation7], %s208
        // Predicated region
        $region33: #{tpu_custom_call.1} parent=27 // pred_check
          %p210 = pneg %p93
        $region34: #{tpu_custom_call.1} parent=27 // pred_check_branch
          %212 = sbr.rel (%p210) target = $region36
        $region35: #{tpu_custom_call.1} parent=27 // pred_region
          %214 = dma.done %s206, 256
        $region36: #{tpu_custom_call.1} parent=27 // pred_fallthru
          _
        %s215 = sand.u32 %s48, 1
        %s216 = scalar_lea.sflag [#allocation5], %s215
        %s217 = sand.u32 %s48, 1
        %s218 = smul.addr %s217, 16
        %s219 = scalar_lea.vmem [#allocation4], %s218
        %p220 = pneg %p61
        %p221 = pneg %p58
        %s222 = sand.u32 %s80, 1
        %s223 = scalar_lea.sflag [#allocation8], %s222
        %s224 = sand.u32 %s80, 1
        %s225 = smul.addr %s224, 16
        %s226 = scalar_lea.vmem [#allocation7], %s225
        %p227 = pneg %p93
        %p228 = pneg %p90
        %p229 = pneg %p119
        %p230 = pneg %p116
        %s231 = sand.u32 %s106, 1
        %s232 = scalar_lea.sflag [#allocation6], %s231
        %s233 = sand.u32 %s106, 1
        %s234 = scalar_lea.vmem [#allocation9], %s233
        %s235 = sadd.s32 %s26, %s27
        %p236 = scmp.lt.s32.totalorder %s235, 0
        %s237 = scalar_select %p236, %s235, 0
        %s238 = smul.u32 2, %s237
        %s239 = sadd.s32 %s26, %s27
        %p240 = scmp.lt.s32.totalorder %s239, 0
        %s241 = scalar_select %p240, %s239, 0
        %s242 = smul.u32 2, %s241
        %p243 = scmp.eq.s32.totalorder %s27, 0
        // Predicated region
        $region37: #{tpu_custom_call.1} parent=27 // pred_check
          %p244 = pneg %p243
        $region38: #{tpu_custom_call.1} parent=27 // pred_check_branch
          %246 = sbr.rel (%p244) target = $region40
        $region39: #{tpu_custom_call.1} parent=27 // pred_region
          %247 = vst [vmem:[#allocation2] sm:$0xff] 0.0
          %248 = vst [vmem:[#allocation2 + $0x8] sm:$0xff] 0.0
          %249 = vst [vmem:[#allocation3] sm:$0xff] 0.0
          %250 = vst [vmem:[#allocation3 + $0x8] sm:$0xff] 0.0
        $region40: #{tpu_custom_call.1} parent=27 // pred_fallthru
          _
        %s251 = sadd.s32 %s26, %s27
        %s252 = smul.u32 %s251, 16
        %v253 = vlaneseq
        %v254 = vshrl.u32 %v253, 7
        %v255 = vadd.s32 %v254, 8
        %v256 = vstv %s252
        %v257 = vadd.s32 %v256, %v254
        %v258 = vadd.s32 %v256, %v255
        %vm259 = vcmp.lt.s32.totalorder %v257, 16
        %vm260 = vcmp.lt.s32.totalorder %v258, 16
        %v261 = vld [vmem:[%s199] sm:$0xff]
        %v262 = vld [vmem:[%s199 + $0x8] sm:$0xff]
        %v263 = vld [vmem:[%s209] sm:$0xff]
        %v264 = vld [vmem:[%s209 + $0x8] sm:$0xff]
        %vm265 = vcmp.ge.f32.partialorder %v261, 0.5
        %vm266 = vcmp.ge.f32.partialorder %v262, 0.5
        %v267 = vsel %vm265, 1.0, 0.0
        %v268 = vsel %vm266, 1.0, 0.0
        %vm269 = vcmp.eq.f32.partialorder %v263, 1.0
        %vm270 = vcmp.eq.f32.partialorder %v264, 1.0
        %v271 = vld [vmem:[#allocation2] sm:$0xff]
        %v272 = vld [vmem:[#allocation2 + $0x8] sm:$0xff]
        %vm273 = vmand %vm259, %vm269
        %vm274 = vmand %vm260, %vm270
        %vm275 = vcmp.eq.f32.partialorder %v267, %v263
        %vm276 = vcmp.eq.f32.partialorder %v268, %v264
        %vm277 = vmand %vm273, %vm275
        %vm278 = vmand %vm274, %vm276
        %v279 = vsel %vm277, 1.0, 0.0
        %v280 = vsel %vm278, 1.0, 0.0
        %v281 = vadd.f32 %v271, %v279
        %v282 = vadd.f32 %v272, %v280
        %283 = vst [vmem:[#allocation2] sm:$0xff] %v281
        %284 = vst [vmem:[#allocation2 + $0x8] sm:$0xff] %v282
        %v285 = vld [vmem:[#allocation3] sm:$0xff]
        %v286 = vld [vmem:[#allocation3 + $0x8] sm:$0xff]
        %vm287 = vmxor %vm269, 1
        %vm288 = vmxor %vm270, 1
        %vm289 = vmand %vm259, %vm287
        %vm290 = vmand %vm260, %vm288
        %vm291 = vcmp.ne.f32.partialorder %v267, %v263
        %vm292 = vcmp.ne.f32.partialorder %v268, %v264
        %vm293 = vmand %vm289, %vm291
        %vm294 = vmand %vm290, %vm292
        %v295 = vsel %vm293, 1.0, 0.0
        %v296 = vsel %vm294, 1.0, 0.0
        %v297 = vadd.f32 %v285, %v295
        %v298 = vadd.f32 %v286, %v296
        %299 = vst [vmem:[#allocation3] sm:$0xff] %v297
        %300 = vst [vmem:[#allocation3 + $0x8] sm:$0xff] %v298
        // Predicated region
        $region41: #{tpu_custom_call.1} parent=27 // pred_check
          %p301 = pneg %p243
        $region42: #{tpu_custom_call.1} parent=27 // pred_check_branch
          %303 = sbr.rel (%p301) target = $region44
        $region43: #{tpu_custom_call.1} parent=27 // pred_region
          %v304 = vld [vmem:[#allocation2] sm:$0xff]
          %v305 = vld [vmem:[#allocation2 + $0x8] sm:$0xff]
          %v306 = vadd.f32 %v304, %v305
          %307 = vadd.xlane.f32.xlu0 %v306
          %v308 = vpop.xlane.xlu0 %307
          %v309 = vrot.slane %v308, 4
          %v310 = vadd.f32 %v308, %v309
          %v311 = vrot.slane %v310, 2
          %v312 = vadd.f32 %v310, %v311
          %v313 = vrot.slane %v312, 1
          %v314 = vadd.f32 %v312, %v313
          %s315 = vtos %v314
          %v316 = vld [vmem:[#allocation3] sm:$0xff]
          %v317 = vld [vmem:[#allocation3 + $0x8] sm:$0xff]
          %v318 = vadd.f32 %v316, %v317
          %319 = vadd.xlane.f32.xlu0 %v318
          %v320 = vpop.xlane.xlu0 %319
          %v321 = vrot.slane %v320, 4
          %v322 = vadd.f32 %v320, %v321
          %v323 = vrot.slane %v322, 2
          %v324 = vadd.f32 %v322, %v323
          %v325 = vrot.slane %v324, 1
          %v326 = vadd.f32 %v324, %v325
          %s327 = vtos %v326
          %v328 = vlaneseq
          %v329 = vand.u32 %v328, 127
          %vm330 = vcmp.eq.s32.totalorder %v329, 0
          %vm331 = vcmp.eq.s32.totalorder %v329, 1
          %v332 = vstv %s327
          %v333 = vsel %vm331, %v332, 0.0
          %v334 = vstv %s315
          %v335 = vsel %vm330, %v334, %v333
          %336 = vst [vmem:[%s234] sm:$0x1] %v335
        $region44: #{tpu_custom_call.1} parent=27 // pred_fallthru
          _
        %s337 = sand.u32 %s106, 1
        %s338 = scalar_lea.sflag [#allocation6], %s337
        %s339 = sand.u32 %s106, 1
        %s340 = scalar_lea.vmem [#allocation9], %s339
        // Predicated region
        $region45: #{tpu_custom_call.1} parent=27 // pred_check
          %p341 = pneg %p116
        $region46: #{tpu_custom_call.1} parent=27 // pred_check_branch
          %343 = sbr.rel (%p341) target = $region48
        $region47: #{tpu_custom_call.1} parent=27 // pred_region
          %345 = vsyncadd %s338, 0
          %s346 = scalar_lea.hbm %s2, %s26
          %s348 = sshll.u32 %s340, 4
          %s349 = int_to_ptr.vmem [resolvable:$true] %s348
          %s350 = sshll.u32 %s346, 4
          %s351 = int_to_ptr.hbm [resolvable:$true] %s350
          %353 = dma.vmem_to_hbm [thread:$0]  %s349, 16, %s351, %s338
        $region48: #{tpu_custom_call.1} parent=27 // pred_fallthru
          _
      $region28: #{tpu_custom_call.1} parent=5 // pred_fallthru
        _
      %p354 = scmp.le.s32.totalorder 2, %s17
      // Predicated region
      $region49: #{tpu_custom_call.1} parent=5 // pred_check
        %p355 = pneg %p354
      $region50: #{tpu_custom_call.1} parent=5 // pred_check_branch
        %357 = sbr.rel (%p355) target = $region52
      $region51: #{tpu_custom_call.1} parent=5 // pred_region
        %s358 = ssub.s32 %s17, 2
        // Predicated region
        $region53: #{tpu_custom_call.1} parent=51 // pred_check
          %p359 = pneg %p122
        $region54: #{tpu_custom_call.1} parent=51 // pred_check_branch
          %361 = sbr.rel (%p359) target = $region56
        $region55: #{tpu_custom_call.1} parent=51 // pred_region
          %s362 = sand.u32 %s107, 1
          %s363 = scalar_lea.sflag [#allocation6], %s362
          %s364 = sand.u32 %s107, 1
          %s365 = scalar_lea.vmem [#allocation9], %s364
          %367 = dma.done %s363, 16
        $region56: #{tpu_custom_call.1} parent=51 // pred_fallthru
          _
      $region52: #{tpu_custom_call.1} parent=5 // pred_fallthru
        _
    $region6: #{tpu_custom_call.1} parent=1 // loop_footer
      %s21 = sadd.s32 1, %s17
    $region7: #{tpu_custom_call.1} parent=1 // loop_footer_branch
      %16 = sbr.rel target = $region3
    $region8: #{tpu_custom_call.1} parent=1 // loop_exit
      _
    %368 = vsyncpa [#allocation5], 1
    %s369 = scalar_lea.sflag [#allocation5], 1
    %370 = vsyncpa %s369, 1
    %371 = vsyncpa [#allocation8], 1
    %s372 = scalar_lea.sflag [#allocation8], 1
    %373 = vsyncpa %s372, 1
    %374 = vsyncpa [#allocation6], 1
    %s375 = scalar_lea.sflag [#allocation6], 1
    %376 = vsyncpa %s375, 1

</llo_original>
